<compile_context>
chip_gen: v5e
topology: v5e:2x2
jax: 0.10.0
libtpu: 0.0.40
codegen_flags: <defaults>
</compile_context>

<pallas_src>
import functools

import jax
import jax.numpy as jnp
from jax import lax
from jax.experimental import pallas as pl
from jax.experimental.pallas import tpu as pltpu


def _lse_kernel(pred_ref, out_ref, m_sc, l_sc, *, n, c, tn, tc):
    # pred_ref: (tn, tc) logits in native dtype (VMEM)
    # out_ref:  (1, 1)   f32 partial sum of per-row logsumexp for this N tile (SMEM)
    # m_sc/l_sc: (tn, 1) f32 running max / running exp-sum scratch
    i = pl.program_id(0)          # N-tile index ("parallel")
    j = pl.program_id(1)          # C-tile index ("arbitrary" reduction)

    @pl.when(j == 0)
    def _():
        m_sc[...] = jnp.full_like(m_sc, -jnp.inf)
        l_sc[...] = jnp.zeros_like(l_sc)

    x = pred_ref[...].astype(jnp.float32)                      # (tn, tc)

    # Mask class-dim overhang to -inf (only compiled in when C is ragged).
    # Tile-local iota vs. scalar limit: all-true on every tile but the last.
    if c % tc != 0:
        lane = lax.broadcasted_iota(jnp.int32, (tn, tc), 1)
        x = jnp.where(lane < (c - j * tc), x, -jnp.inf)

    # Online (flash-style) logsumexp update. Row-overhang garbage (if any) may
    # produce inf/NaN here but is row-independent and dropped at finalize.
    m_old = m_sc[...]
    m_new = jnp.maximum(m_old, jnp.max(x, axis=-1, keepdims=True))
    l_sc[...] = l_sc[...] * jnp.exp(m_old - m_new) + jnp.sum(
        jnp.exp(x - m_new), axis=-1, keepdims=True)
    m_sc[...] = m_new

    @pl.when(j == pl.num_programs(1) - 1)
    def _():
        lse = m_sc[...] + jnp.log(l_sc[...])                   # (tn, 1)
        if n % tn != 0:
            row = lax.broadcasted_iota(jnp.int32, (tn, 1), 0)
            lse = jnp.where(row < (n - i * tn), lse, 0.0)      # drop overhang rows
        out_ref[0, 0] = jnp.sum(lse)


def cross_entropy_loss(pred, label, *, tn=None, tc=None):
    """pred: (N, C) logits (any float dtype), label: (N,) ints -> scalar mean loss."""
    n, c = pred.shape
    itemsize = pred.dtype.itemsize

    # Class tile: keep the full class dim if small (block == full dim is always
    # legal), otherwise stream it in 2048-lane chunks (multiple of 128).
    if tc is None:
        tc = c if c <= 4096 else 2048
    # Row tile: ~2 MiB of NATIVE-dtype pred bytes per grid step, rounded to a
    # multiple of 32 rows; use the full N if it already fits.
    if tn is None:
        cap = max(32, ((2 << 20) // (tc * itemsize)) // 32 * 32)
        tn = n if n <= cap else cap
        # v7x has 2 TensorCores: ensure the "parallel" N axis has >= 2 blocks
        # when N is big enough to split, so both cores get work.
        if tn >= n and n >= 64:
            tn = min(tn, ((-(-n // 2)) + 31) // 32 * 32)

    num_nt = pl.cdiv(n, tn)
    num_ct = pl.cdiv(c, tc)

    # VMEM budget: double-buffered native pred tile + a few f32 temporaries,
    # clamped to stay comfortably inside v7x's 64 MiB per-core VMEM while still
    # raising the smaller scoped defaults on v5e/v6e.
    tile_native = tn * tc * itemsize
    tile_f32 = tn * tc * 4
    vmem_limit = int(min(48 << 20,
                         max(32 << 20, 2 * tile_native + 4 * tile_f32 + (1 << 20))))

    kernel = functools.partial(_lse_kernel, n=n, c=c, tn=tn, tc=tc)

    cost = pl.CostEstimate(
        flops=5 * n * c,                 # max/sub/mul-add chain per element
        transcendentals=n * c,           # one exp per element
        bytes_accessed=n * c * itemsize + 4 * num_nt,
    )

    partial_lse = pl.pallas_call(
        kernel,
        out_shape=jax.ShapeDtypeStruct((num_nt, 1), jnp.float32),
        grid_spec=pltpu.PrefetchScalarGridSpec(
            num_scalar_prefetch=0,
            grid=(num_nt, num_ct),
            in_specs=[
                pl.BlockSpec((tn, tc), lambda i, j: (i, j)),
            ],
            out_specs=pl.BlockSpec(
                (1, 1), lambda i, j: (i, 0), memory_space=pltpu.SMEM
            ),
            scratch_shapes=[
                pltpu.VMEM((tn, 1), jnp.float32),   # running max
                pltpu.VMEM((tn, 1), jnp.float32),   # running exp-sum
            ],
        ),
        compiler_params=pltpu.CompilerParams(
            dimension_semantics=("parallel", "arbitrary"),
            vmem_limit_bytes=vmem_limit,
        ),
        cost_estimate=cost,
    )(pred)

    # Label-logit pick out of the hot loop: tiny XLA gather (N elements of HBM),
    # then mean(LSE_i - x_{i, y_i}) == (sum(LSE) - sum(picked)) / N.
    label2d = label.astype(jnp.int32).reshape(n, 1)
    picked = jnp.take_along_axis(pred, label2d, axis=1).astype(jnp.float32)  # (n, 1)
    return (jnp.sum(partial_lse) - jnp.sum(picked)) / jnp.float32(n)


if __name__ == "__main__":
    key = jax.random.PRNGKey(0)
    k1, k2, k3, k4, k5, k6 = jax.random.split(key, 6)

    # Case 1: small single-tile case (original toy shape), f32 logits.
    N1, C1 = 8, 32
    pred1 = jax.random.normal(k1, (N1, C1), dtype=jnp.float32)
    label1 = jax.random.randint(k2, (N1,), 0, C1, dtype=jnp.int32)
    loss1 = cross_entropy_loss(pred1, label1)
    jax.block_until_ready(loss1)
    ref1 = jnp.mean(jax.nn.logsumexp(pred1, axis=-1) - pred1[jnp.arange(N1), label1])
    assert jnp.allclose(loss1, ref1, rtol=1e-5, atol=1e-4), (loss1, ref1)

    # Case 2: multi-tile grid with ragged edges in both N and C, bf16 logits
    # kept in HBM and upcast per tile inside the kernel.
    N2, C2 = 20, 200
    pred2 = jax.random.normal(k3, (N2, C2), dtype=jnp.float32).astype(jnp.bfloat16)
    label2 = jax.random.randint(k4, (N2,), 0, C2, dtype=jnp.int32)
    loss2 = cross_entropy_loss(pred2, label2, tn=16, tc=128)   # grid = (2, 2)
    jax.block_until_ready(loss2)
    p2 = pred2.astype(jnp.float32)
    ref2 = jnp.mean(jax.nn.logsumexp(p2, axis=-1) - p2[jnp.arange(N2), label2])
    assert jnp.allclose(loss2, ref2, rtol=1e-5, atol=1e-4), (loss2, ref2)

    # Case 3: default heuristics with a streamed, ragged class dim (C > 4096,
    # three C tiles, last one masked).
    N3, C3 = 48, 4500
    pred3 = jax.random.normal(k5, (N3, C3), dtype=jnp.float32)
    label3 = jax.random.randint(k6, (N3,), 0, C3, dtype=jnp.int32)
    loss3 = cross_entropy_loss(pred3, label3)
    jax.block_until_ready(loss3)
    ref3 = jnp.mean(jax.nn.logsumexp(pred3, axis=-1) - pred3[jnp.arange(N3), label3])
    assert jnp.allclose(loss3, ref3, rtol=1e-5, atol=1e-4), (loss3, ref3)

    print("KERNEL_OK")
</pallas_src>

<mosaic_0001>
module attributes {stable_mosaic.version = 11 : i64} {
  func.func @_lse_kernel(%arg0: i32, %arg1: i32, %arg2: memref<8x32xf32, #tpu.memory_space<vmem>>, %arg3: memref<1x1xf32, #tpu.memory_space<smem>>, %arg4: memref<8x1xf32, #tpu.memory_space<vmem>>, %arg5: memref<8x1xf32, #tpu.memory_space<vmem>>) attributes {dimension_semantics = [#tpu.dimension_semantics<parallel>, #tpu.dimension_semantics<arbitrary>], iteration_bounds = array<i64: 1, 1>, scalar_prefetch = 0 : i64, scratch_operands = 2 : i64, tpu.core_type = #tpu.core_type<tc>, window_params = [{transform_indices = @transform_0, window_bounds = array<i64: 8, 32>}, {transform_indices = @transform_1, window_bounds = array<i64: 1, 1>}]} {
    %c0_i32 = arith.constant 0 : i32
    %0 = arith.cmpi eq, %arg1, %c0_i32 : i32
    %1 = arith.extui %0 : i1 to i32
    %c0_i32_0 = arith.constant 0 : i32
    %2 = arith.cmpi ne, %1, %c0_i32_0 : i32
    scf.if %2 {
      %cst_13 = arith.constant 0xFF800000 : f32
      %23 = vector.broadcast %cst_13 : f32 to vector<8x1xf32>
      %c0_14 = arith.constant 0 : index
      %c0_15 = arith.constant 0 : index
      %24 = vector.load %arg4[%c0_14, %c0_15] : memref<8x1xf32, #tpu.memory_space<vmem>>, vector<8x1xf32>
      tpu.vector_store %arg4[%c0_14, %c0_15], %23 {strides = array<i32>} : memref<8x1xf32, #tpu.memory_space<vmem>>, vector<8x1xf32>,
      %cst_16 = arith.constant 0.000000e+00 : f32
      %25 = vector.broadcast %cst_16 : f32 to vector<8x1xf32>
      %c0_17 = arith.constant 0 : index
      %c0_18 = arith.constant 0 : index
      %26 = vector.load %arg5[%c0_17, %c0_18] : memref<8x1xf32, #tpu.memory_space<vmem>>, vector<8x1xf32>
      tpu.vector_store %arg5[%c0_17, %c0_18], %25 {strides = array<i32>} : memref<8x1xf32, #tpu.memory_space<vmem>>, vector<8x1xf32>,
    } else {
    }
    %c0 = arith.constant 0 : index
    %c0_1 = arith.constant 0 : index
    %3 = vector.load %arg2[%c0, %c0_1] : memref<8x32xf32, #tpu.memory_space<vmem>>, vector<8x32xf32>
    %c0_2 = arith.constant 0 : index
    %c0_3 = arith.constant 0 : index
    %4 = vector.load %arg4[%c0_2, %c0_3] : memref<8x1xf32, #tpu.memory_space<vmem>>, vector<8x1xf32>
    %cst = arith.constant dense<0xFF800000> : vector<8xf32>
    %5 = vector.multi_reduction <maximumf>, %3, %cst [1] : vector<8x32xf32> to vector<8xf32>
    %6 = vector.shape_cast %5 : vector<8xf32> to vector<8x1xf32>
    %7 = arith.maximumf %4, %6 : vector<8x1xf32>
    %c0_4 = arith.constant 0 : index
    %c0_5 = arith.constant 0 : index
    %8 = vector.load %arg5[%c0_4, %c0_5] : memref<8x1xf32, #tpu.memory_space<vmem>>, vector<8x1xf32>
    %9 = arith.subf %4, %7 : vector<8x1xf32>
    %10 = math.exp %9 : vector<8x1xf32>
    %11 = arith.mulf %8, %10 : vector<8x1xf32>
    %12 = vector.broadcast %7 : vector<8x1xf32> to vector<8x32xf32>
    %13 = arith.subf %3, %12 : vector<8x32xf32>
    %14 = math.exp %13 : vector<8x32xf32>
    %cst_6 = arith.constant dense<0.000000e+00> : vector<8xf32>
    %15 = vector.multi_reduction <add>, %14, %cst_6 [1] : vector<8x32xf32> to vector<8xf32>
    %16 = vector.shape_cast %15 : vector<8xf32> to vector<8x1xf32>
    %17 = arith.addf %11, %16 : vector<8x1xf32>
    %c0_7 = arith.constant 0 : index
    %c0_8 = arith.constant 0 : index
    %18 = vector.load %arg5[%c0_7, %c0_8] : memref<8x1xf32, #tpu.memory_space<vmem>>, vector<8x1xf32>
    tpu.vector_store %arg5[%c0_7, %c0_8], %17 {strides = array<i32>} : memref<8x1xf32, #tpu.memory_space<vmem>>, vector<8x1xf32>,
    %c0_9 = arith.constant 0 : index
    %c0_10 = arith.constant 0 : index
    %19 = vector.load %arg4[%c0_9, %c0_10] : memref<8x1xf32, #tpu.memory_space<vmem>>, vector<8x1xf32>
    tpu.vector_store %arg4[%c0_9, %c0_10], %7 {strides = array<i32>} : memref<8x1xf32, #tpu.memory_space<vmem>>, vector<8x1xf32>,
    %c0_i32_11 = arith.constant 0 : i32
    %20 = arith.cmpi eq, %arg1, %c0_i32_11 : i32
    %21 = arith.extui %20 : i1 to i32
    %c0_i32_12 = arith.constant 0 : i32
    %22 = arith.cmpi ne, %21, %c0_i32_12 : i32
    scf.if %22 {
      %c0_13 = arith.constant 0 : index
      %c0_14 = arith.constant 0 : index
      %23 = vector.load %arg4[%c0_13, %c0_14] : memref<8x1xf32, #tpu.memory_space<vmem>>, vector<8x1xf32>
      %c0_15 = arith.constant 0 : index
      %c0_16 = arith.constant 0 : index
      %24 = vector.load %arg5[%c0_15, %c0_16] : memref<8x1xf32, #tpu.memory_space<vmem>>, vector<8x1xf32>
      %25 = math.log %24 : vector<8x1xf32>
      %26 = arith.addf %23, %25 : vector<8x1xf32>
      %27 = vector.shape_cast %26 : vector<8x1xf32> to vector<1x8x1xf32>
      %cst_17 = arith.constant dense<0.000000e+00> : vector<1xf32>
      %28 = vector.multi_reduction <add>, %27, %cst_17 [1, 2] : vector<1x8x1xf32> to vector<1xf32>
      %29 = vector.shape_cast %28 : vector<1xf32> to vector<1x1x1xf32>
      %30 = vector.extract %29[0, 0, 0] : f32 from vector<1x1x1xf32>
      %c0_18 = arith.constant 0 : index
      %c0_19 = arith.constant 0 : index
      %31 = memref.load %arg3[%c0_18, %c0_19] : memref<1x1xf32, #tpu.memory_space<smem>>
      memref.store %30, %arg3[%c0_18, %c0_19] : memref<1x1xf32, #tpu.memory_space<smem>>
    } else {
    }
    return
  }
  func.func @transform_0(%arg0: i32, %arg1: i32) -> (i32, i32) {
    %c0_i32 = arith.constant 0 : i32
    return %arg0, %arg1 : i32, i32
  }
  func.func @transform_1(%arg0: i32, %arg1: i32) -> (i32, i32) {
    %c0_i32 = arith.constant 0 : i32
    %c0_i32_0 = arith.constant 0 : i32
    return %arg0, %c0_i32 : i32, i32
  }
}

</mosaic_0001>

<llo_original>
// kernel: tpu_custom_call.1
$region0: #{tpu_custom_call.1}
  #allocation0 [shape = 'u32[]', space=smem, size = 0x4, offset = 0x4, fixed_abs, tag = 'smem constant byte address 0x4 - core index']
  #allocation1 [shape = 'u32[72,128]{1,0:T(1,128)}', space=vmem, size = 0x9000, scoped, tag = 'internal scratch']
  #allocation2 [shape = 'f32[8,1]{1,0:T(8,128)}', space=vmem, size = 0x1000, scoped, tag = 'scratch operand']
  #allocation3 [shape = 'f32[8,1]{1,0:T(8,128)}', space=vmem, size = 0x1000, scoped, tag = 'scratch operand']
  %s0 = inlined_call_operand.hbm [shape: f32[8,32], index: 0, kind: input, shape index: {}]
  %s1 = inlined_call_operand.hbm [shape: f32[1,1], index: 1, kind: output, shape index: {}]
  %s2 = sld [smem:[#allocation0]]
  $region26: #{tpu_custom_call.1} parent=0
    _
  %s4 = ssub.s32 1, %s2
  %s5 = scalar_select 0, %s4, %s2
  $region1: #{tpu_custom_call.1} parent=0
    #allocation4 [shape = 'u8[4096]{0}', space=vmem, size = 0x1000, scoped, tag = 'input window, operand 0, single buffered']
    #allocation5 [shape = 's32[1]{0}', space=sflag, size = 0x4, scoped, tag = 'scoped memory for tpu_custom_call.1']
    #allocation6 [shape = 's32[1]{0}', space=sflag, size = 0x4, scoped, tag = 'scoped memory for tpu_custom_call.1']
    #allocation7 [shape = 'u8[512]{0}', space=smem, size = 0x200, scoped, tag = 'output window, operand 0, single buffered']
    %6 = vsyncpa [#allocation5], 0
    %7 = vsyncpa [#allocation6], 0
    // Predicated region
    $region2: #{tpu_custom_call.1} parent=1 // pred_check
      _
    $region3: #{tpu_custom_call.1} parent=1 // pred_check_branch
      %9 = sbr.rel (0) target = $region5
    $region4: #{tpu_custom_call.1} parent=1 // pred_region
      %11 = vsyncadd [#allocation5], 0
      %s13 = sshll.u32 %s0, 4
      %s14 = int_to_ptr.hbm [resolvable:$true] %s13
      %s15 = sshll.u32 [#allocation4], 4
      %s16 = int_to_ptr.vmem [resolvable:$true] %s15
      %18 = dma.hbm_to_vmem [thread:$0]  %s14, 128, %s16, [#allocation5]
    $region5: #{tpu_custom_call.1} parent=1 // pred_fallthru
      _
    // Predicated region
    $region6: #{tpu_custom_call.1} parent=1 // pred_check
      _
    $region7: #{tpu_custom_call.1} parent=1 // pred_check_branch
      %20 = sbr.rel (0) target = $region9
    $region8: #{tpu_custom_call.1} parent=1 // pred_region
      %22 = dma.done [#allocation5], 128
    $region9: #{tpu_custom_call.1} parent=1 // pred_fallthru
      _
    %p23 = scmp.eq.s32.totalorder 0, 0
    // Predicated region
    $region10: #{tpu_custom_call.1} parent=1 // pred_check
      %p24 = pneg %p23
    $region11: #{tpu_custom_call.1} parent=1 // pred_check_branch
      %26 = sbr.rel (%p24) target = $region13
    $region12: #{tpu_custom_call.1} parent=1 // pred_region
      %vm27 = vcmask 7168
      %28 = vst.msk [vmem:[#allocation2] sm:$0xff] %vm27, -inf
      %29 = vst.msk [vmem:[#allocation3] sm:$0xff] %vm27, 0.0
    $region13: #{tpu_custom_call.1} parent=1 // pred_fallthru
      _
    %v30 = vld [vmem:[#allocation4] sm:$0xff]
    %v31 = vld [vmem:[#allocation2] sm:$0xff]
    %vm32 = vcmask 261120
    %v33 = vsel %vm32, %v30, -inf
    %34 = vmax.xlane.f32.xlu0 %v33
    %v35 = vpop.xlane.xlu0 %34
    %v36 = vmax.f32 %v31, %v35
    %v37 = vld [vmem:[#allocation3] sm:$0xff]
    %v38 = vsub.f32 %v31, %v36
    %v39 = vmul.f32 %v38, 1.442695
    %v40 = vpow.pop %v39
    %v41 = vmul.f32 %v37, %v40
    %43 = vset.pattern.permute.xlu0 0
    %44 = vperm.xlu0 %43, %v36
    %v45 = vpop.permute.xlu0 %44
    %v47 = vsub.f32 %v30, %v45
    %v48 = vmul.f32 %v47, 1.442695
    %v49 = vpow.pop %v48
    %v50 = vsel %vm32, %v49, 0.0
    %51 = vadd.xlane.f32.xlu0 %v50
    %v52 = vpop.xlane.xlu0 %51
    %v53 = vadd.f32 %v41, %v52
    %vm54 = vcmask 7168
    %55 = vst.msk [vmem:[#allocation3] sm:$0xff] %vm54, %v53
    %56 = vst.msk [vmem:[#allocation2] sm:$0xff] %vm54, %v36
    // Predicated region
    $region14: #{tpu_custom_call.1} parent=1 // pred_check
      %p57 = pneg %p23
    $region15: #{tpu_custom_call.1} parent=1 // pred_check_branch
      %59 = sbr.rel (%p57) target = $region17
    $region16: #{tpu_custom_call.1} parent=1 // pred_region
      %v60 = vld [vmem:[#allocation2] sm:$0xff]
      %v61 = vld [vmem:[#allocation3] sm:$0xff]
      %v62 = vlog2.pop %v61
      %v63 = vmul.f32 %v62, 0.6931472
      %v64 = vadd.f32 %v60, %v63
      %v65 = vsel %vm54, %v64, 0.0
      %66 = vadd.xlane.f32.xlu0 %v65
      %v67 = vpop.xlane.xlu0 %66
      %v68 = vrot.slane %v67, 4
      %v69 = vadd.f32 %v67, %v68
      %v70 = vrot.slane %v69, 2
      %v71 = vadd.f32 %v69, %v70
      %v72 = vrot.slane %v71, 1
      %v73 = vadd.f32 %v71, %v72
      %s74 = vtos %v73
      %s75 = scalar_lea.smem [#allocation7], 0
      %76 = sst [smem:[%s75]] %s74
    $region17: #{tpu_custom_call.1} parent=1 // pred_fallthru
      _
    // Predicated region
    $region18: #{tpu_custom_call.1} parent=1 // pred_check
      _
    $region19: #{tpu_custom_call.1} parent=1 // pred_check_branch
      %78 = sbr.rel (0) target = $region21
    $region20: #{tpu_custom_call.1} parent=1 // pred_region
      %80 = vsyncadd [#allocation6], 0
      %s82 = sshll.u32 %s1, 4
      %s83 = int_to_ptr.hbm [resolvable:$true] %s82
      %85 = dma.smem_to_hbm [#allocation7], 16, %s83, [#allocation6]
    $region21: #{tpu_custom_call.1} parent=1 // pred_fallthru
      _
    // Predicated region
    $region22: #{tpu_custom_call.1} parent=1 // pred_check
      _
    $region23: #{tpu_custom_call.1} parent=1 // pred_check_branch
      %87 = sbr.rel (0) target = $region25
    $region24: #{tpu_custom_call.1} parent=1 // pred_region
      %89 = dma.done [#allocation6], 16
    $region25: #{tpu_custom_call.1} parent=1 // pred_fallthru
      _
    %90 = sfence
    %91 = vsyncpa [#allocation5], 1
    %92 = vsyncpa [#allocation6], 1

</llo_original>
